<compile_context>
chip_gen: v5e
topology: v5e:2x2
jax: 0.10.0
libtpu: 0.0.40
codegen_flags: <defaults>
</compile_context>

<pallas_src>
import math

import jax
import jax.numpy as jnp
from jax import lax
from jax.experimental import pallas as pl
from jax.experimental.pallas import tpu as pltpu

# ---- module constants (from the PyTorch source) -----------------------------
DMODEL = 512
MAX_LEN = 256
VOCAB_SIZE = 64          # stand-in for len(lookup_table); synthetic vocabulary


# ---- kernel ------------------------------------------------------------------
def _embedding_kernel(ids_ref, tok_tbl_ref, pos_tile_ref, o_ref):
    """One grid step handles `tile_n` flattened tokens.

    ids_ref      : (tile_n, 1)       int32   token ids for this tile
    tok_tbl_ref  : (vocab, dmodel)   float32 full token table (grid-invariant block)
    pos_tile_ref : (tile_n, dmodel)  float32 pre-tiled positional rows: row r holds
                                             pos_table[r % T] (grid-invariant because
                                             tile_n % T == 0)
    o_ref        : (tile_n, dmodel)  output tile
    """
    tile_n = o_ref.shape[0]
    vocab = tok_tbl_ref.shape[0]

    # --- token embedding gather as one-hot @ table on the MXU (M = tile_n) ---
    ids = ids_ref[...]                                                 # (tile_n, 1)
    tok_oh = (ids == lax.broadcasted_iota(jnp.int32, (tile_n, vocab), 1)
              ).astype(jnp.float32)                                    # (tile_n, vocab)
    tok_emb = jnp.dot(tok_oh, tok_tbl_ref[...],
                      preferred_element_type=jnp.float32)              # (tile_n, dmodel)

    # --- positional embedding: plain VPU add, no second matmul ---
    o_ref[...] = (tok_emb + pos_tile_ref[...]).astype(o_ref.dtype)


# ---- wrapper -----------------------------------------------------------------
def _choose_tile_n(n_tokens, seq_len, preferred=512):
    """Pick tile_n: a multiple of lcm(T, 8) (so the positional pattern repeats per
    tile and the sublane dim is aligned), as close to `preferred` as useful."""
    base = seq_len * 8 // math.gcd(seq_len, 8)          # lcm(T, 8)
    blocks_needed = pl.cdiv(n_tokens, base)
    k = max(1, min(max(1, preferred // base), blocks_needed))
    return base * k


def embedding_forward(x, token_table, pos_table, *, preferred_tile_n=512,
                      out_dtype=jnp.float32):
    """x: (B, T) integer token ids -> (B, T, dmodel) embeddings."""
    B, T = x.shape
    vocab, dmodel = token_table.shape
    assert T <= pos_table.shape[0], "sequence longer than max_len"

    N = B * T
    tile_n = _choose_tile_n(N, T, preferred_tile_n)
    n_tiles = pl.cdiv(N, tile_n)
    N_pad = n_tiles * tile_n

    ids_flat = x.reshape(N, 1).astype(jnp.int32)
    if N_pad != N:
        # pad with token id 0 (a valid row); padded output rows are sliced off below
        ids_flat = jnp.pad(ids_flat, ((0, N_pad - N), (0, 0)))

    # Positional rows for one tile: row r -> pos_table[r % T]. Identical for every
    # tile (tile_n % T == 0), so the old positional one-hot matmul is eliminated.
    pos_tiled = jnp.tile(pos_table[:T].astype(jnp.float32), (tile_n // T, 1))

    cost = pl.CostEstimate(
        flops=2 * N_pad * vocab * dmodel,
        transcendentals=0,
        bytes_accessed=(N_pad * 4                    # ids
                        + vocab * dmodel * 4         # token table
                        + tile_n * dmodel * 4        # positional tile
                        + N_pad * dmodel * 4),       # output
    )

    out_flat = pl.pallas_call(
        _embedding_kernel,
        out_shape=jax.ShapeDtypeStruct((N_pad, dmodel), out_dtype),
        grid_spec=pltpu.PrefetchScalarGridSpec(
            num_scalar_prefetch=0,
            grid=(n_tiles,),
            in_specs=[
                pl.BlockSpec((tile_n, 1), lambda i: (i, 0)),       # token ids tile
                # Grid-invariant blocks (constant index_map): Mosaic keeps them resident
                # across grid steps (no re-DMA per step).
                # TODO(synk): for realistic vocab sizes (e.g. 32K x 512 f32 = 64 MiB) the
                # full table no longer fits VMEM (v7x: 64 MiB); switch to a vocab-tiled
                # "arbitrary" grid axis with a VMEM accumulator, or a scalar-prefetch /
                # manual-DMA row gather.
                pl.BlockSpec((vocab, dmodel), lambda i: (0, 0)),   # full token table
                pl.BlockSpec((tile_n, dmodel), lambda i: (0, 0)),  # pre-tiled pos rows
            ],
            out_specs=pl.BlockSpec((tile_n, dmodel), lambda i: (i, 0)),
        ),
        compiler_params=pltpu.CompilerParams(
            dimension_semantics=("parallel",),       # shards the N axis across v7x's 2 TCs
            vmem_limit_bytes=32 * 1024 * 1024,       # explicit budget (safe on v5e/v6e/v7x)
        ),
        cost_estimate=cost,
    )(ids_flat, token_table.astype(jnp.float32), pos_tiled)

    return out_flat[:N].reshape(B, T, dmodel)


# ---- demo / self-check ---------------------------------------------------------
if __name__ == "__main__":
    key = jax.random.PRNGKey(0)
    k_tok, k_pos, k_x, k_x2 = jax.random.split(key, 4)

    # nn.Embedding default init: N(0, 1)
    token_table = jax.random.normal(k_tok, (VOCAB_SIZE, DMODEL), dtype=jnp.float32)
    pos_table = jax.random.normal(k_pos, (MAX_LEN, DMODEL), dtype=jnp.float32)

    def ref_fn(ids):
        T = ids.shape[1]
        return token_table[ids] + pos_table[jnp.arange(T)][None, :, :]

    # small shape consistent with the module (B=2, T=8)
    B, T = 2, 8
    x = jax.random.randint(k_x, (B, T), 0, VOCAB_SIZE, dtype=jnp.int32)
    out = jax.block_until_ready(embedding_forward(x, token_table, pos_table))
    assert out.shape == (B, T, DMODEL)
    assert jnp.allclose(out, ref_fn(x), atol=1e-5, rtol=1e-5), "mismatch vs reference (small)"

    # larger check: exercises multiple grid steps and the zero-padded final tile
    # (N = 800 -> tile_n = 512, grid = 2, 224 padded rows discarded)
    B2, T2 = 100, 8
    x2 = jax.random.randint(k_x2, (B2, T2), 0, VOCAB_SIZE, dtype=jnp.int32)
    out2 = jax.block_until_ready(embedding_forward(x2, token_table, pos_table))
    assert out2.shape == (B2, T2, DMODEL)
    assert jnp.allclose(out2, ref_fn(x2), atol=1e-5, rtol=1e-5), "mismatch vs reference (tiled)"

    print("KERNEL_OK")
</pallas_src>

<mosaic_0001>
module attributes {stable_mosaic.version = 11 : i64} {
  func.func @_embedding_kernel(%arg0: i32, %arg1: memref<16x1xi32, #tpu.memory_space<vmem>>, %arg2: memref<64x512xf32, #tpu.memory_space<vmem>>, %arg3: memref<16x512xf32, #tpu.memory_space<vmem>>, %arg4: memref<16x512xf32, #tpu.memory_space<vmem>>) attributes {dimension_semantics = [#tpu.dimension_semantics<parallel>], iteration_bounds = array<i64: 1>, scalar_prefetch = 0 : i64, scratch_operands = 0 : i64, tpu.core_type = #tpu.core_type<tc>, window_params = [{transform_indices = @transform_0, window_bounds = array<i64: 16, 1>}, {pipeline_mode = #tpu.pipeline_mode<synchronous>, transform_indices = @transform_1, window_bounds = array<i64: 64, 512>}, {pipeline_mode = #tpu.pipeline_mode<synchronous>, transform_indices = @transform_2, window_bounds = array<i64: 16, 512>}, {transform_indices = @transform_3, window_bounds = array<i64: 16, 512>}]} {
    %c0 = arith.constant 0 : index
    %c0_0 = arith.constant 0 : index
    %0 = vector.load %arg1[%c0, %c0_0] : memref<16x1xi32, #tpu.memory_space<vmem>>, vector<16x1xi32>
    %1 = tpu.iota {dimensions = array<i32: 1>} : vector<16x64xi32>
    %2 = vector.broadcast %0 : vector<16x1xi32> to vector<16x64xi32>
    %3 = arith.cmpi eq, %2, %1 : vector<16x64xi32>
    %4 = arith.extui %3 : vector<16x64xi1> to vector<16x64xi32>
    %5 = arith.sitofp %4 : vector<16x64xi32> to vector<16x64xf32>
    %c0_1 = arith.constant 0 : index
    %c0_2 = arith.constant 0 : index
    %6 = vector.load %arg2[%c0_1, %c0_2] : memref<64x512xf32, #tpu.memory_space<vmem>>, vector<64x512xf32>
    %cst = arith.constant dense<0.000000e+00> : vector<16x512xf32>
    %7 = tpu.matmul %5, %6, %cst {dimension_numbers = #tpu.dot_dimension_numbers<[1], [0], [0], [1], [0, 0, 1, 1], [], []>} : vector<16x64xf32>, vector<64x512xf32>, vector<16x512xf32> -> vector<16x512xf32>
    %c0_3 = arith.constant 0 : index
    %c0_4 = arith.constant 0 : index
    %8 = vector.load %arg3[%c0_3, %c0_4] : memref<16x512xf32, #tpu.memory_space<vmem>>, vector<16x512xf32>
    %9 = arith.addf %7, %8 : vector<16x512xf32>
    %c0_5 = arith.constant 0 : index
    %c0_6 = arith.constant 0 : index
    %10 = vector.load %arg4[%c0_5, %c0_6] : memref<16x512xf32, #tpu.memory_space<vmem>>, vector<16x512xf32>
    tpu.vector_store %arg4[%c0_5, %c0_6], %9 {strides = array<i32>} : memref<16x512xf32, #tpu.memory_space<vmem>>, vector<16x512xf32>,
    return
  }
  func.func @transform_0(%arg0: i32) -> (i32, i32) {
    %c0_i32 = arith.constant 0 : i32
    %c0_i32_0 = arith.constant 0 : i32
    return %arg0, %c0_i32 : i32, i32
  }
  func.func @transform_1(%arg0: i32) -> (i32, i32) {
    %c0_i32 = arith.constant 0 : i32
    %c0_i32_0 = arith.constant 0 : i32
    %c0_i32_1 = arith.constant 0 : i32
    return %c0_i32, %c0_i32_0 : i32, i32
  }
  func.func @transform_2(%arg0: i32) -> (i32, i32) {
    %c0_i32 = arith.constant 0 : i32
    %c0_i32_0 = arith.constant 0 : i32
    %c0_i32_1 = arith.constant 0 : i32
    return %c0_i32, %c0_i32_0 : i32, i32
  }
  func.func @transform_3(%arg0: i32) -> (i32, i32) {
    %c0_i32 = arith.constant 0 : i32
    %c0_i32_0 = arith.constant 0 : i32
    return %arg0, %c0_i32 : i32, i32
  }
}

</mosaic_0001>

<llo_original>
// kernel: tpu_custom_call.1
$region0: #{tpu_custom_call.1}
  #allocation0 [shape = 'u32[]', space=smem, size = 0x4, offset = 0x4, fixed_abs, tag = 'smem constant byte address 0x4 - core index']
  #allocation1 [shape = 'u32[72,128]{1,0:T(1,128)}', space=vmem, size = 0x9000, scoped, tag = 'internal scratch']
  %s0 = inlined_call_operand.vmem [shape: s32[16,1], index: 0, kind: input, shape index: {}]
  %s1 = inlined_call_operand.hbm [shape: f32[64,512], index: 1, kind: input, shape index: {}]
  %s2 = inlined_call_operand.hbm [shape: f32[16,512], index: 2, kind: input, shape index: {}]
  %s3 = inlined_call_operand.hbm [shape: f32[16,512], index: 3, kind: output, shape index: {}]
  %s4 = sld [smem:[#allocation0]]
  $region30: #{tpu_custom_call.1} parent=0
    _
  %s6 = ssub.s32 1, %s4
  %s7 = scalar_select 0, %s6, %s4
  $region1: #{tpu_custom_call.1} parent=0
    #allocation2 [shape = 'u8[131072]{0}', space=vmem, size = 0x20000, scoped, tag = 'input window, operand 1, single buffered']
    #allocation3 [shape = 's32[1]{0}', space=sflag, size = 0x4, scoped, tag = 'scoped memory for tpu_custom_call.1']
    #allocation4 [shape = 's32[1]{0}', space=sflag, size = 0x4, scoped, tag = 'scoped memory for tpu_custom_call.1']
    #allocation5 [shape = 'u8[32768]{0}', space=vmem, size = 0x8000, scoped, tag = 'input window, operand 2, single buffered']
    #allocation6 [shape = 's32[1]{0}', space=sflag, size = 0x4, scoped, tag = 'scoped memory for tpu_custom_call.1']
    #allocation7 [shape = 'u8[32768]{0}', space=vmem, size = 0x8000, scoped, tag = 'output window, operand 0, single buffered']
    %8 = vsyncpa [#allocation3], 0
    %9 = vsyncpa [#allocation6], 0
    %10 = vsyncpa [#allocation4], 0
    // Predicated region
    $region2: #{tpu_custom_call.1} parent=1 // pred_check
      _
    $region3: #{tpu_custom_call.1} parent=1 // pred_check_branch
      %12 = sbr.rel (0) target = $region5
    $region4: #{tpu_custom_call.1} parent=1 // pred_region
      _
    $region5: #{tpu_custom_call.1} parent=1 // pred_fallthru
      _
    // Predicated region
    $region6: #{tpu_custom_call.1} parent=1 // pred_check
      _
    $region7: #{tpu_custom_call.1} parent=1 // pred_check_branch
      %14 = sbr.rel (0) target = $region9
    $region8: #{tpu_custom_call.1} parent=1 // pred_region
      %16 = vsyncadd [#allocation3], 0
      %s17 = sshll.u32 %s1, 4
      %s18 = int_to_ptr.hbm [resolvable:$true] %s17
      %s19 = sshll.u32 [#allocation2], 4
      %s20 = int_to_ptr.vmem [resolvable:$true] %s19
      %25 = dma.hbm_to_vmem [thread:$0]  %s18, 4096, %s20, [#allocation3], 512, 512, 32
    $region9: #{tpu_custom_call.1} parent=1 // pred_fallthru
      _
    // Predicated region
    $region10: #{tpu_custom_call.1} parent=1 // pred_check
      _
    $region11: #{tpu_custom_call.1} parent=1 // pred_check_branch
      %27 = sbr.rel (0) target = $region13
    $region12: #{tpu_custom_call.1} parent=1 // pred_region
      %29 = vsyncadd [#allocation6], 0
      %s30 = sshll.u32 %s2, 4
      %s31 = int_to_ptr.hbm [resolvable:$true] %s30
      %s32 = sshll.u32 [#allocation5], 4
      %s33 = int_to_ptr.vmem [resolvable:$true] %s32
      %38 = dma.hbm_to_vmem [thread:$0]  %s31, 1024, %s33, [#allocation6], 512, 512, 32
    $region13: #{tpu_custom_call.1} parent=1 // pred_fallthru
      _
    // Predicated region
    $region14: #{tpu_custom_call.1} parent=1 // pred_check
      _
    $region15: #{tpu_custom_call.1} parent=1 // pred_check_branch
      %40 = sbr.rel (0) target = $region17
    $region16: #{tpu_custom_call.1} parent=1 // pred_region
      %42 = dma.done [#allocation3], 4096
    $region17: #{tpu_custom_call.1} parent=1 // pred_fallthru
      _
    // Predicated region
    $region18: #{tpu_custom_call.1} parent=1 // pred_check
      _
    $region19: #{tpu_custom_call.1} parent=1 // pred_check_branch
      %44 = sbr.rel (0) target = $region21
    $region20: #{tpu_custom_call.1} parent=1 // pred_region
      %46 = dma.done [#allocation6], 1024
    $region21: #{tpu_custom_call.1} parent=1 // pred_fallthru
      _
    %v47 = vld [vmem:[%s0] sm:$0xff]
    %v48 = vld [vmem:[%s0 + $0x8] sm:$0xff]
    %v49 = vlaneseq
    %v50 = vand.u32 %v49, 127
    %51 = vset.pattern.permute.xlu0 0
    %52 = vperm.xlu0 %51, %v47
    %v53 = vpop.permute.xlu0 %52
    %54 = vset.pattern.permute.xlu0 0
    %55 = vperm.xlu0 %54, %v48
    %v56 = vpop.permute.xlu0 %55
    %vm57 = vcmp.eq.s32.totalorder %v53, %v50
    %vm58 = vcmp.eq.s32.totalorder %v56, %v50
    %v59 = vsel %vm57, 1, 0
    %v60 = vsel %vm58, 1, 0
    %v61 = vcvt.s32.f32 %v59
    %v62 = vcvt.s32.f32 %v60
    %v63 = vld [vmem:[#allocation2] sm:$0xff]
    %v64 = vld [vmem:[#allocation2 + $0x8] sm:$0xff]
    %v65 = vld [vmem:[#allocation2 + $0x10] sm:$0xff]
    %v66 = vld [vmem:[#allocation2 + $0x18] sm:$0xff]
    %v67 = vld [vmem:[#allocation2 + $0x20] sm:$0xff]
    %v68 = vld [vmem:[#allocation2 + $0x28] sm:$0xff]
    %v69 = vld [vmem:[#allocation2 + $0x30] sm:$0xff]
    %v70 = vld [vmem:[#allocation2 + $0x38] sm:$0xff]
    %v71 = vld [vmem:[#allocation2 + $0x40] sm:$0xff]
    %v72 = vld [vmem:[#allocation2 + $0x48] sm:$0xff]
    %v73 = vld [vmem:[#allocation2 + $0x50] sm:$0xff]
    %v74 = vld [vmem:[#allocation2 + $0x58] sm:$0xff]
    %v75 = vld [vmem:[#allocation2 + $0x60] sm:$0xff]
    %v76 = vld [vmem:[#allocation2 + $0x68] sm:$0xff]
    %v77 = vld [vmem:[#allocation2 + $0x70] sm:$0xff]
    %v78 = vld [vmem:[#allocation2 + $0x78] sm:$0xff]
    %v79 = vld [vmem:[#allocation2 + $0x80] sm:$0xff]
    %v80 = vld [vmem:[#allocation2 + $0x88] sm:$0xff]
    %v81 = vld [vmem:[#allocation2 + $0x90] sm:$0xff]
    %v82 = vld [vmem:[#allocation2 + $0x98] sm:$0xff]
    %v83 = vld [vmem:[#allocation2 + $0xa0] sm:$0xff]
    %v84 = vld [vmem:[#allocation2 + $0xa8] sm:$0xff]
    %v85 = vld [vmem:[#allocation2 + $0xb0] sm:$0xff]
    %v86 = vld [vmem:[#allocation2 + $0xb8] sm:$0xff]
    %v87 = vld [vmem:[#allocation2 + $0xc0] sm:$0xff]
    %v88 = vld [vmem:[#allocation2 + $0xc8] sm:$0xff]
    %v89 = vld [vmem:[#allocation2 + $0xd0] sm:$0xff]
    %v90 = vld [vmem:[#allocation2 + $0xd8] sm:$0xff]
    %v91 = vld [vmem:[#allocation2 + $0xe0] sm:$0xff]
    %v92 = vld [vmem:[#allocation2 + $0xe8] sm:$0xff]
    %v93 = vld [vmem:[#allocation2 + $0xf0] sm:$0xff]
    %v94 = vld [vmem:[#allocation2 + $0xf8] sm:$0xff]
    %v95 = vld [vmem:[#allocation5] sm:$0xff]
    %v96 = vld [vmem:[#allocation5 + $0x8] sm:$0xff]
    %v97 = vld [vmem:[#allocation5 + $0x10] sm:$0xff]
    %v98 = vld [vmem:[#allocation5 + $0x18] sm:$0xff]
    %v99 = vld [vmem:[#allocation5 + $0x20] sm:$0xff]
    %v100 = vld [vmem:[#allocation5 + $0x28] sm:$0xff]
    %v101 = vld [vmem:[#allocation5 + $0x30] sm:$0xff]
    %v102 = vld [vmem:[#allocation5 + $0x38] sm:$0xff]
    %vm103 = vcmask 523264
    %v105 = vsel %vm103, %v61, 0
    %v108 = vsel %vm103, %v62, 0
    %110 = vmatpush.msra.mxu0 0.0
    %111 = vmatpush.msra.mxu0 0.0
    %112 = vmatpush.msra.mxu0 0.0
    %113 = vmatpush.msra.mxu0 0.0
    %114 = vmatpush.msra.mxu0 0.0
    %115 = vmatpush.msra.mxu0 0.0
    %116 = vmatpush.msra.mxu0 0.0
    %117 = vmatpush.msra.mxu0 0.0
    %118 = vmatpush.msra.mxu0 %v91
    %119 = vmatpush.msra.mxu0 %v87
    %120 = vmatpush.msra.mxu0 %v83
    %121 = vmatpush.msra.mxu0 %v79
    %122 = vmatpush.msra.mxu0 %v75
    %123 = vmatpush.msra.mxu0 %v71
    %124 = vmatpush.msra.mxu0 %v67
    %125 = vmatpush.msra.mxu0 %v63
    %126 = vmatmul.f32.gmra.mxu0 %v105
    %v127 = vpop.f32.mrf.mxu0
    %v128 = vadd.f32 %v95, %v127
    %129 = vmatmul.f32.gmra.mxu0 %v108
    %v130 = vpop.f32.mrf.mxu0
    %v131 = vadd.f32 %v99, %v130
    %132 = vdwg.mxu0
    %133 = vmatpush.msra.mxu0 0.0
    %134 = vmatpush.msra.mxu0 0.0
    %135 = vmatpush.msra.mxu0 0.0
    %136 = vmatpush.msra.mxu0 0.0
    %137 = vmatpush.msra.mxu0 0.0
    %138 = vmatpush.msra.mxu0 0.0
    %139 = vmatpush.msra.mxu0 0.0
    %140 = vmatpush.msra.mxu0 0.0
    %141 = vmatpush.msra.mxu0 %v92
    %142 = vmatpush.msra.mxu0 %v88
    %143 = vmatpush.msra.mxu0 %v84
    %144 = vmatpush.msra.mxu0 %v80
    %145 = vmatpush.msra.mxu0 %v76
    %146 = vmatpush.msra.mxu0 %v72
    %147 = vmatpush.msra.mxu0 %v68
    %148 = vmatpush.msra.mxu0 %v64
    %149 = vmatmul.f32.gmra.mxu0 %v105
    %v150 = vpop.f32.mrf.mxu0
    %v151 = vadd.f32 %v96, %v150
    %152 = vmatmul.f32.gmra.mxu0 %v108
    %v153 = vpop.f32.mrf.mxu0
    %v154 = vadd.f32 %v100, %v153
    %155 = vdwg.mxu0
    %156 = vmatpush.msra.mxu0 0.0
    %157 = vmatpush.msra.mxu0 0.0
    %158 = vmatpush.msra.mxu0 0.0
    %159 = vmatpush.msra.mxu0 0.0
    %160 = vmatpush.msra.mxu0 0.0
    %161 = vmatpush.msra.mxu0 0.0
    %162 = vmatpush.msra.mxu0 0.0
    %163 = vmatpush.msra.mxu0 0.0
    %164 = vmatpush.msra.mxu0 %v93
    %165 = vmatpush.msra.mxu0 %v89
    %166 = vmatpush.msra.mxu0 %v85
    %167 = vmatpush.msra.mxu0 %v81
    %168 = vmatpush.msra.mxu0 %v77
    %169 = vmatpush.msra.mxu0 %v73
    %170 = vmatpush.msra.mxu0 %v69
    %171 = vmatpush.msra.mxu0 %v65
    %172 = vmatmul.f32.gmra.mxu0 %v105
    %v173 = vpop.f32.mrf.mxu0
    %v174 = vadd.f32 %v97, %v173
    %175 = vmatmul.f32.gmra.mxu0 %v108
    %v176 = vpop.f32.mrf.mxu0
    %v177 = vadd.f32 %v101, %v176
    %178 = vdwg.mxu0
    %179 = vmatpush.msra.mxu0 0.0
    %180 = vmatpush.msra.mxu0 0.0
    %181 = vmatpush.msra.mxu0 0.0
    %182 = vmatpush.msra.mxu0 0.0
    %183 = vmatpush.msra.mxu0 0.0
    %184 = vmatpush.msra.mxu0 0.0
    %185 = vmatpush.msra.mxu0 0.0
    %186 = vmatpush.msra.mxu0 0.0
    %187 = vmatpush.msra.mxu0 %v94
    %188 = vmatpush.msra.mxu0 %v90
    %189 = vmatpush.msra.mxu0 %v86
    %190 = vmatpush.msra.mxu0 %v82
    %191 = vmatpush.msra.mxu0 %v78
    %192 = vmatpush.msra.mxu0 %v74
    %193 = vmatpush.msra.mxu0 %v70
    %194 = vmatpush.msra.mxu0 %v66
    %195 = vmatmul.f32.gmra.mxu0 %v105
    %v196 = vpop.f32.mrf.mxu0
    %v197 = vadd.f32 %v98, %v196
    %198 = vmatmul.f32.gmra.mxu0 %v108
    %v199 = vpop.f32.mrf.mxu0
    %v200 = vadd.f32 %v102, %v199
    %201 = vdwg.mxu0
    %202 = vst [vmem:[#allocation7] sm:$0xff] %v128
    %203 = vst [vmem:[#allocation7 + $0x8] sm:$0xff] %v151
    %204 = vst [vmem:[#allocation7 + $0x10] sm:$0xff] %v174
    %205 = vst [vmem:[#allocation7 + $0x18] sm:$0xff] %v197
    %206 = vst [vmem:[#allocation7 + $0x20] sm:$0xff] %v131
    %207 = vst [vmem:[#allocation7 + $0x28] sm:$0xff] %v154
    %208 = vst [vmem:[#allocation7 + $0x30] sm:$0xff] %v177
    %209 = vst [vmem:[#allocation7 + $0x38] sm:$0xff] %v200
    // Predicated region
    $region22: #{tpu_custom_call.1} parent=1 // pred_check
      _
    $region23: #{tpu_custom_call.1} parent=1 // pred_check_branch
      %211 = sbr.rel (0) target = $region25
    $region24: #{tpu_custom_call.1} parent=1 // pred_region
      %213 = vsyncadd [#allocation4], 0
      %s214 = sshll.u32 [#allocation7], 4
      %s215 = int_to_ptr.vmem [resolvable:$true] %s214
      %s216 = sshll.u32 %s3, 4
      %s217 = int_to_ptr.hbm [resolvable:$true] %s216
      %222 = dma.vmem_to_hbm [thread:$0]  %s215, 1024, %s217, [#allocation4], 512, 512, 32
    $region25: #{tpu_custom_call.1} parent=1 // pred_fallthru
      _
    // Predicated region
    $region26: #{tpu_custom_call.1} parent=1 // pred_check
      _
    $region27: #{tpu_custom_call.1} parent=1 // pred_check_branch
      %224 = sbr.rel (0) target = $region29
    $region28: #{tpu_custom_call.1} parent=1 // pred_region
      %226 = dma.done [#allocation4], 1024
    $region29: #{tpu_custom_call.1} parent=1 // pred_fallthru
      _
    %227 = vsyncpa [#allocation3], 1
    %228 = vsyncpa [#allocation6], 1
    %229 = vsyncpa [#allocation4], 1

</llo_original>
